<compile_context>
chip_gen: v7x
topology: tpu7x:2x2x1
jax: 0.10.0
libtpu: 0.0.40
codegen_flags: <defaults>
</compile_context>

<pallas_src>
import functools

import jax
import jax.numpy as jnp
from jax.experimental import pallas as pl
from jax.experimental.pallas import tpu as pltpu


def _round_up(n, m):
    return ((n + m - 1) // m) * m


def _cls_prediction_kernel(x_ref, w1_ref, b1gw2_ref, c_ref, o_ref, *, eps):
    # x_ref:     (TN, D_in)  native dtype (cast to bf16 below for the MXU)
    # w1_ref:    (D_in, H)   bf16, grid-invariant VMEM resident
    # b1gw2_ref: (2, H)      f32: row 0 = b1, row 1 = gamma * w2
    # c_ref:     (1, 1)      f32: beta @ w2 + b2
    # o_ref:     (TN, 1)
    x = x_ref[...]
    if x.dtype != jnp.bfloat16:
        x = x.astype(jnp.bfloat16)          # MXU is bf16-native on v5e/v6e/v7x

    b1 = b1gw2_ref[0:1, :]
    gw2 = b1gw2_ref[1:2, :]

    # Linear 1 on the MXU with f32 accumulation, bias, ReLU (all post-matmul math f32).
    h = jnp.dot(x, w1_ref[...], preferred_element_type=jnp.float32) + b1
    h = jnp.maximum(h, 0.0)

    # LayerNorm (biased variance) fused with the final Linear(H, 1):
    #   y = (h - mu) * rsqrt(var + eps) * gamma + beta
    #   o = y @ w2 + b2 = rsqrt(var + eps) * sum((h - mu) * (gamma*w2)) + (beta@w2 + b2)
    mu = jnp.mean(h, axis=-1, keepdims=True)
    xc = h - mu
    var = jnp.mean(xc * xc, axis=-1, keepdims=True)
    proj = jnp.sum(xc * gw2, axis=-1, keepdims=True)            # (TN, 1)
    o = proj * jax.lax.rsqrt(var + eps) + c_ref[...]
    o_ref[...] = o.astype(o_ref.dtype)


def cls_prediction(x, w1, b1, gamma, beta, w2, b2, *, eps=1e-12, tile_n=512):
    """Fused ClsPrediction forward.

    x:  [..., D_in]
    w1: [D_in, H], b1: [H]
    gamma, beta: [H]          (LayerNorm affine)
    w2: [H], b2: scalar       (final Linear(H, 1))
    returns: [..., 1] float32
    """
    lead = x.shape[:-1]
    d_in = x.shape[-1]
    h = w1.shape[1]

    n = 1
    for d in lead:
        n *= int(d)

    x2 = x.reshape(n, d_in)                                       # no dtype copy, no pad

    # Fold LN affine + final projection (tiny, one-time, outside the hot loop).
    f32 = jnp.float32
    gw2 = gamma.astype(f32) * w2.astype(f32)
    b1gw2 = jnp.stack([b1.astype(f32), gw2], axis=0)              # (2, H) f32
    c = (jnp.dot(beta.astype(f32), w2.astype(f32))
         + jnp.asarray(b2, dtype=f32)).reshape(1, 1)              # (1, 1) f32
    w1b = w1.astype(jnp.bfloat16)                                 # small resident weight

    # Row tile: large enough to amortize ~0.35us/step overhead, capped so the grid
    # keeps >= 2 steps (v7x has 2 TensorCores sharing the "parallel" axis).  Edge
    # blocks are masked by Pallas, so n need not be divisible by the tile.
    if n < 8:
        tile = max(n, 1)
    else:
        tile = min(tile_n, _round_up(pl.cdiv(n, 2), 8))
    grid = (pl.cdiv(n, tile),)

    kernel = functools.partial(_cls_prediction_kernel, eps=eps)

    out = pl.pallas_call(
        kernel,
        out_shape=jax.ShapeDtypeStruct((n, 1), jnp.float32),
        grid=grid,
        in_specs=[
            pl.BlockSpec((tile, d_in), lambda i: (i, 0)),   # x rows (streamed)
            pl.BlockSpec((d_in, h), lambda i: (0, 0)),      # W1 bf16 (VMEM resident)
            pl.BlockSpec((2, h), lambda i: (0, 0)),         # [b1 ; gamma*w2]
            pl.BlockSpec((1, 1), lambda i: (0, 0)),         # beta@w2 + b2
        ],
        out_specs=pl.BlockSpec((tile, 1), lambda i: (i, 0)),
        compiler_params=pltpu.CompilerParams(
            dimension_semantics=("parallel",)),              # v7x: both TCs share rows
    )(x2, w1b, b1gw2, c)

    return out.reshape(*lead, 1)


def _reference(x, w1, b1, gamma, beta, w2, b2, eps=1e-12, matmul_dtype=None):
    hp = jax.lax.Precision.HIGHEST
    if matmul_dtype is not None:
        hmm = jnp.einsum("...d,dh->...h", x.astype(matmul_dtype), w1.astype(matmul_dtype),
                         preferred_element_type=jnp.float32)
    else:
        hmm = jnp.einsum("...d,dh->...h", x, w1, precision=hp)
    hv = jnp.maximum(hmm + b1, 0.0)
    mu = jnp.mean(hv, axis=-1, keepdims=True)
    xc = hv - mu
    var = jnp.mean(xc * xc, axis=-1, keepdims=True)
    y = (xc * jax.lax.rsqrt(var + eps)) * gamma + beta
    o = jnp.einsum("...h,h->...", y, w2, precision=hp)[..., None] + b2
    return o


if __name__ == "__main__":
    # Small deterministic config consistent with the module (hidden == input size,
    # x is [B, S, D_in]).
    B, S, D_IN, H = 2, 8, 32, 32
    eps = 1e-12

    key = jax.random.PRNGKey(0)
    k_x, k_w1, k_b1, k_g, k_bt, k_w2, k_b2 = jax.random.split(key, 7)

    x = jax.random.normal(k_x, (B, S, D_IN), dtype=jnp.float32)
    w1 = 0.02 * jax.random.normal(k_w1, (D_IN, H), dtype=jnp.float32)
    b1 = 0.02 * jax.random.normal(k_b1, (H,), dtype=jnp.float32)
    gamma = 1.0 + 0.1 * jax.random.normal(k_g, (H,), dtype=jnp.float32)
    beta = 0.1 * jax.random.normal(k_bt, (H,), dtype=jnp.float32)
    w2 = 0.02 * jax.random.normal(k_w2, (H,), dtype=jnp.float32)
    b2 = 0.02 * jax.random.normal(k_b2, (), dtype=jnp.float32)

    out = cls_prediction(x, w1, b1, gamma, beta, w2, b2, eps=eps)
    out = jax.block_until_ready(out)
    assert out.shape == (B, S, 1), out.shape

    # Tight check vs a reference that mirrors the kernel's bf16-operand / f32-accum matmul.
    ref_bf16 = _reference(x, w1, b1, gamma, beta, w2, b2, eps=eps, matmul_dtype=jnp.bfloat16)
    assert jnp.allclose(out, ref_bf16, atol=2e-3, rtol=2e-3), "mismatch vs bf16-matmul reference"

    # Loose semantic check vs the full-f32 HIGHEST-precision reference.
    ref_f32 = _reference(x, w1, b1, gamma, beta, w2, b2, eps=eps)
    assert jnp.allclose(out, ref_f32, atol=5e-2, rtol=5e-2), "mismatch vs f32 reference"

    print("KERNEL_OK")
</pallas_src>

<mosaic_0001>
module attributes {stable_mosaic.version = 11 : i64} {
  func.func @_cls_prediction_kernel(%arg0: i32, %arg1: memref<8x32xf32, #tpu.memory_space<vmem>>, %arg2: memref<32x32xbf16, #tpu.memory_space<vmem>>, %arg3: memref<2x32xf32, #tpu.memory_space<vmem>>, %arg4: memref<1x1xf32, #tpu.memory_space<vmem>>, %arg5: memref<8x1xf32, #tpu.memory_space<vmem>>) attributes {dimension_semantics = [#tpu.dimension_semantics<parallel>], iteration_bounds = array<i64: 2>, scalar_prefetch = 0 : i64, scratch_operands = 0 : i64, tpu.core_type = #tpu.core_type<tc>, window_params = [{transform_indices = @transform_0, window_bounds = array<i64: 8, 32>}, {pipeline_mode = #tpu.pipeline_mode<synchronous>, transform_indices = @transform_1, window_bounds = array<i64: 32, 32>}, {pipeline_mode = #tpu.pipeline_mode<synchronous>, transform_indices = @transform_2, window_bounds = array<i64: 2, 32>}, {pipeline_mode = #tpu.pipeline_mode<synchronous>, transform_indices = @transform_3, window_bounds = array<i64: 1, 1>}, {transform_indices = @transform_4, window_bounds = array<i64: 8, 1>}]} {
    %c0 = arith.constant 0 : index
    %c0_0 = arith.constant 0 : index
    %0 = vector.load %arg1[%c0, %c0_0] : memref<8x32xf32, #tpu.memory_space<vmem>>, vector<8x32xf32>
    %1 = arith.truncf %0 : vector<8x32xf32> to vector<8x32xbf16>
    %c0_1 = arith.constant 0 : index
    %c0_2 = arith.constant 0 : index
    %2 = vector.load %arg3[%c0_1, %c0_2] : memref<2x32xf32, #tpu.memory_space<vmem>>, vector<1x32xf32>
    %c1 = arith.constant 1 : index
    %c0_3 = arith.constant 0 : index
    %3 = vector.load %arg3[%c1, %c0_3] : memref<2x32xf32, #tpu.memory_space<vmem>>, vector<1x32xf32>
    %c0_4 = arith.constant 0 : index
    %c0_5 = arith.constant 0 : index
    %4 = vector.load %arg2[%c0_4, %c0_5] : memref<32x32xbf16, #tpu.memory_space<vmem>>, vector<32x32xbf16>
    %cst = arith.constant dense<0.000000e+00> : vector<8x32xf32>
    %5 = tpu.matmul %1, %4, %cst {dimension_numbers = #tpu.dot_dimension_numbers<[1], [0], [0], [1], [0, 0, 1, 1], [], []>} : vector<8x32xbf16>, vector<32x32xbf16>, vector<8x32xf32> -> vector<8x32xf32>
    %6 = vector.broadcast %2 : vector<1x32xf32> to vector<8x32xf32>
    %7 = arith.addf %5, %6 : vector<8x32xf32>
    %cst_6 = arith.constant 0.000000e+00 : f32
    %8 = vector.broadcast %cst_6 : f32 to vector<8x32xf32>
    %9 = arith.maximumf %7, %8 : vector<8x32xf32>
    %cst_7 = arith.constant dense<0.000000e+00> : vector<8xf32>
    %10 = vector.multi_reduction <add>, %9, %cst_7 [1] : vector<8x32xf32> to vector<8xf32>
    %11 = vector.shape_cast %10 : vector<8xf32> to vector<8x1xf32>
    %cst_8 = arith.constant 3.200000e+01 : f32
    %12 = vector.broadcast %cst_8 : f32 to vector<8x1xf32>
    %13 = arith.divf %11, %12 : vector<8x1xf32>
    %14 = vector.broadcast %13 : vector<8x1xf32> to vector<8x32xf32>
    %15 = arith.subf %9, %14 : vector<8x32xf32>
    %16 = arith.mulf %15, %15 : vector<8x32xf32>
    %cst_9 = arith.constant dense<0.000000e+00> : vector<8xf32>
    %17 = vector.multi_reduction <add>, %16, %cst_9 [1] : vector<8x32xf32> to vector<8xf32>
    %18 = vector.shape_cast %17 : vector<8xf32> to vector<8x1xf32>
    %cst_10 = arith.constant 3.200000e+01 : f32
    %19 = vector.broadcast %cst_10 : f32 to vector<8x1xf32>
    %20 = arith.divf %18, %19 : vector<8x1xf32>
    %21 = vector.broadcast %3 : vector<1x32xf32> to vector<8x32xf32>
    %22 = arith.mulf %15, %21 : vector<8x32xf32>
    %cst_11 = arith.constant dense<0.000000e+00> : vector<8xf32>
    %23 = vector.multi_reduction <add>, %22, %cst_11 [1] : vector<8x32xf32> to vector<8xf32>
    %24 = vector.shape_cast %23 : vector<8xf32> to vector<8x1xf32>
    %cst_12 = arith.constant 9.99999996E-13 : f32
    %25 = vector.broadcast %cst_12 : f32 to vector<8x1xf32>
    %26 = arith.addf %20, %25 : vector<8x1xf32>
    %27 = math.rsqrt %26 : vector<8x1xf32>
    %28 = arith.mulf %24, %27 : vector<8x1xf32>
    %c0_13 = arith.constant 0 : index
    %c0_14 = arith.constant 0 : index
    %29 = vector.load %arg4[%c0_13, %c0_14] : memref<1x1xf32, #tpu.memory_space<vmem>>, vector<1x1xf32>
    %30 = vector.broadcast %29 : vector<1x1xf32> to vector<8x1xf32>
    %31 = arith.addf %28, %30 : vector<8x1xf32>
    %c0_15 = arith.constant 0 : index
    %c0_16 = arith.constant 0 : index
    %32 = vector.load %arg5[%c0_15, %c0_16] : memref<8x1xf32, #tpu.memory_space<vmem>>, vector<8x1xf32>
    tpu.vector_store %arg5[%c0_15, %c0_16], %31 {strides = array<i32>} : memref<8x1xf32, #tpu.memory_space<vmem>>, vector<8x1xf32>,
    return
  }
  func.func @transform_0(%arg0: i32) -> (i32, i32) {
    %c0_i32 = arith.constant 0 : i32
    %c0_i32_0 = arith.constant 0 : i32
    return %arg0, %c0_i32 : i32, i32
  }
  func.func @transform_1(%arg0: i32) -> (i32, i32) {
    %c0_i32 = arith.constant 0 : i32
    %c0_i32_0 = arith.constant 0 : i32
    %c0_i32_1 = arith.constant 0 : i32
    return %c0_i32, %c0_i32_0 : i32, i32
  }
  func.func @transform_2(%arg0: i32) -> (i32, i32) {
    %c0_i32 = arith.constant 0 : i32
    %c0_i32_0 = arith.constant 0 : i32
    %c0_i32_1 = arith.constant 0 : i32
    return %c0_i32, %c0_i32_0 : i32, i32
  }
  func.func @transform_3(%arg0: i32) -> (i32, i32) {
    %c0_i32 = arith.constant 0 : i32
    %c0_i32_0 = arith.constant 0 : i32
    %c0_i32_1 = arith.constant 0 : i32
    return %c0_i32, %c0_i32_0 : i32, i32
  }
  func.func @transform_4(%arg0: i32) -> (i32, i32) {
    %c0_i32 = arith.constant 0 : i32
    %c0_i32_0 = arith.constant 0 : i32
    return %arg0, %c0_i32 : i32, i32
  }
}

</mosaic_0001>

<llo_original>
// kernel: tpu_custom_call.1
$region0: #{tpu_custom_call.1}
  #allocation0 [shape = 'u32[]', space=smem, size = 0x4, offset = 0x4, fixed_abs, tag = 'smem constant byte address 0x4 - core index']
  #allocation1 [shape = 'u32[144,128]{1,0:T(1,128)}', space=vmem, size = 0x12000, scoped, tag = 'internal scratch']
  #allocation2 [shape = 'f32[1,1]{1,0:T(1,128)S(1)}', space=vmem, size = 0x200, scoped, tag = 'scoped memory for tpu_custom_call.1']
  %s0 = inlined_call_operand.hbm [shape: f32[16,32], index: 0, kind: input, shape index: {}]
  %s1 = inlined_call_operand.hbm [shape: bf16[32,32], index: 1, kind: input, shape index: {}]
  %s2 = inlined_call_operand.vmem [shape: f32[2,32], index: 2, kind: input, shape index: {}]
  %s3 = inlined_call_operand.<no memory space> [shape: f32[1,1], index: 3, kind: input, shape index: {}]
  %s4 = inlined_call_operand.vmem [shape: f32[16,1], index: 4, kind: output, shape index: {}]
  %s5 = sld [smem:[#allocation0]]
  $region57: #{tpu_custom_call.1} parent=0
    _
  %s7 = ssub.s32 1, %s5
  %s8 = scalar_select 0, %s7, %s5
  %v9 = vstv %s3
  %10 = vst [vmem:[#allocation2] sm:$0x1] %v9
  $region1: #{tpu_custom_call.1} parent=0
    #allocation3 [shape = 'u8[8192]{0}', space=vmem, size = 0x2000, scoped, tag = 'input window, operand 0']
    #allocation4 [shape = 's32[2]{0}', space=sflag, size = 0x8, scoped, tag = 'scoped memory for tpu_custom_call.1']
    #allocation5 [shape = 'u8[8192]{0}', space=vmem, size = 0x2000, scoped, tag = 'input window, operand 1, single buffered']
    #allocation6 [shape = 's32[1]{0}', space=sflag, size = 0x4, scoped, tag = 'scoped memory for tpu_custom_call.1']
    %11 = vsyncpa [#allocation4], 0
    %s12 = scalar_lea.sflag [#allocation4], 1
    %13 = vsyncpa %s12, 0
    %14 = vsyncpa [#allocation6], 0
    loop: start=0, step=1, limit=4
    $region2: #{tpu_custom_call.1} parent=1 // loop_pre_header
      _
    $region3: #{tpu_custom_call.1} parent=1 // loop_header
      %s16 = sphi 0, %s20
      %p17 = scmp.ge.s32.totalorder %s16, 4
      %s26 = sphi 0, %s28
      %s29 = sphi 0, %s26
      %s30 = sphi 0, %s29
      %s46 = sphi 0, %s30
      %s50 = sphi 0, %s50
      %s52 = sphi 0, %s50
      %s53 = sphi 0, %s52
      %s67 = sphi 0, %s53
      %s71 = sphi 0, %s71
      %s73 = sphi 0, %s71
      %s74 = sphi 0, %s73
      %s88 = sphi 0, %s74
      %s92 = sphi 0, %s92
      %s94 = sphi 0, %s92
      %s95 = sphi 0, %s94
      %s109 = sphi 0, %s95
      %s115 = sphi 0, %s117
      %s118 = sphi 0, %s115
      %s119 = sphi 0, %s118
      %s135 = sphi 0, %s119
    $region4: #{tpu_custom_call.1} parent=1 // loop_header_branch
      %19 = sbr.rel (%p17) target = $region8
    $region5: #{tpu_custom_call.1} parent=1 // loop_body
      %s21 = ssub.s32 %s16, 1
      %s22 = ssub.s32 %s16, 2
      %s23 = sadd.s32 %s16, 1
      %s24 = ssub.s32 %s16, %s23
      %p25 = scmp.eq.s32.totalorder %s24, 0
      %s27 = sadd.s32 %s26, 1
      %s28 = scalar_select %p25, %s26, %s27
      %p31 = pneg %p25
      %p32 = scmp.eq.s32.totalorder %s16, 1
      %p33 = por %p31, %p32
      %p34 = scmp.ne.s32.totalorder %s26, %s29
      %p35 = scmp.eq.s32.totalorder %s16, 0
      %p36 = por %p34, %p35
      %p37 = scmp.ne.s32.totalorder %s26, %s29
      %p38 = scmp.eq.s32.totalorder %s21, 1
      %p39 = por %p37, %p38
      %p40 = scmp.ne.s32.totalorder %s29, %s30
      %p41 = scmp.eq.s32.totalorder %s21, 0
      %p42 = por %p40, %p41
      %p43 = scmp.ne.s32.totalorder %s29, %s30
      %p44 = scmp.eq.s32.totalorder %s22, 1
      %p45 = por %p43, %p44
      %p47 = scmp.ne.s32.totalorder %s30, %s46
      %p48 = scmp.eq.s32.totalorder %s22, 0
      %p49 = por %p47, %p48
      %s51 = sadd.s32 %s50, 1
      %p54 = scmp.eq.s32.totalorder %s16, 1
      %p55 = scmp.ne.s32.totalorder %s50, %s52
      %p56 = scmp.eq.s32.totalorder %s16, 0
      %p57 = por %p55, %p56
      %p58 = scmp.ne.s32.totalorder %s50, %s52
      %p59 = scmp.eq.s32.totalorder %s21, 1
      %p60 = por %p58, %p59
      %p61 = scmp.ne.s32.totalorder %s52, %s53
      %p62 = scmp.eq.s32.totalorder %s21, 0
      %p63 = por %p61, %p62
      %p64 = scmp.ne.s32.totalorder %s52, %s53
      %p65 = scmp.eq.s32.totalorder %s22, 1
      %p66 = por %p64, %p65
      %p68 = scmp.ne.s32.totalorder %s53, %s67
      %p69 = scmp.eq.s32.totalorder %s22, 0
      %p70 = por %p68, %p69
      %s72 = sadd.s32 %s71, 1
      %p75 = scmp.eq.s32.totalorder %s16, 1
      %p76 = scmp.ne.s32.totalorder %s71, %s73
      %p77 = scmp.eq.s32.totalorder %s16, 0
      %p78 = por %p76, %p77
      %p79 = scmp.ne.s32.totalorder %s71, %s73
      %p80 = scmp.eq.s32.totalorder %s21, 1
      %p81 = por %p79, %p80
      %p82 = scmp.ne.s32.totalorder %s73, %s74
      %p83 = scmp.eq.s32.totalorder %s21, 0
      %p84 = por %p82, %p83
      %p85 = scmp.ne.s32.totalorder %s73, %s74
      %p86 = scmp.eq.s32.totalorder %s22, 1
      %p87 = por %p85, %p86
      %p89 = scmp.ne.s32.totalorder %s74, %s88
      %p90 = scmp.eq.s32.totalorder %s22, 0
      %p91 = por %p89, %p90
      %s93 = sadd.s32 %s92, 1
      %p96 = scmp.eq.s32.totalorder %s16, 1
      %p97 = scmp.ne.s32.totalorder %s92, %s94
      %p98 = scmp.eq.s32.totalorder %s16, 0
      %p99 = por %p97, %p98
      %p100 = scmp.ne.s32.totalorder %s92, %s94
      %p101 = scmp.eq.s32.totalorder %s21, 1
      %p102 = por %p100, %p101
      %p103 = scmp.ne.s32.totalorder %s94, %s95
      %p104 = scmp.eq.s32.totalorder %s21, 0
      %p105 = por %p103, %p104
      %p106 = scmp.ne.s32.totalorder %s94, %s95
      %p107 = scmp.eq.s32.totalorder %s22, 1
      %p108 = por %p106, %p107
      %p110 = scmp.ne.s32.totalorder %s95, %s109
      %p111 = scmp.eq.s32.totalorder %s22, 0
      %p112 = por %p110, %p111
      %s113 = ssub.s32 %s16, %s23
      %p114 = scmp.eq.s32.totalorder %s113, 0
      %s116 = sadd.s32 %s115, 1
      %s117 = scalar_select %p114, %s115, %s116
      %p120 = pneg %p114
      %p121 = scmp.eq.s32.totalorder %s16, 1
      %p122 = por %p120, %p121
      %p123 = scmp.ne.s32.totalorder %s115, %s118
      %p124 = scmp.eq.s32.totalorder %s16, 0
      %p125 = por %p123, %p124
      %p126 = scmp.ne.s32.totalorder %s115, %s118
      %p127 = scmp.eq.s32.totalorder %s21, 1
      %p128 = por %p126, %p127
      %p129 = scmp.ne.s32.totalorder %s118, %s119
      %p130 = scmp.eq.s32.totalorder %s21, 0
      %p131 = por %p129, %p130
      %p132 = scmp.ne.s32.totalorder %s118, %s119
      %p133 = scmp.eq.s32.totalorder %s22, 1
      %p134 = por %p132, %p133
      %p136 = scmp.ne.s32.totalorder %s119, %s135
      %p137 = scmp.eq.s32.totalorder %s22, 0
      %p138 = por %p136, %p137
      %p139 = scmp.le.s32.totalorder 1, %s16
      %p140 = scmp.lt.s32.totalorder %s16, 3
      %p141 = pnand %p139, %p140
      %p142 = pneg %p141
      // Predicated region
      $region9: #{tpu_custom_call.1} parent=5 // pred_check
        _
      $region10: #{tpu_custom_call.1} parent=5 // pred_check_branch
        %144 = sbr.rel (%p141) target = $region12
      $region11: #{tpu_custom_call.1} parent=5 // pred_region
        %s145 = ssub.s32 %s16, 1
        // Predicated region
        $region13: #{tpu_custom_call.1} parent=11 // pred_check
          %p146 = pneg %p63
        $region14: #{tpu_custom_call.1} parent=11 // pred_check_branch
          %148 = sbr.rel (%p146) target = $region16
        $region15: #{tpu_custom_call.1} parent=11 // pred_region
          %s150 = ssub.s32 256, 256
          %151 = vsyncadd [#allocation6], %s150
          %s152 = sshll.u32 [#allocation5], 4
          %s153 = int_to_ptr.vmem [resolvable:$true] %s152
          %158 = dma.hbm_to_vmem [thread:$0]  %s1, 256, %s153, [#allocation6], 64, 64, 4
        $region16: #{tpu_custom_call.1} parent=11 // pred_fallthru
          _
        // Predicated region
        $region17: #{tpu_custom_call.1} parent=11 // pred_check
          %p159 = pneg %p84
        $region18: #{tpu_custom_call.1} parent=11 // pred_check_branch
          %161 = sbr.rel (%p159) target = $region20
        $region19: #{tpu_custom_call.1} parent=11 // pred_region
          _
        $region20: #{tpu_custom_call.1} parent=11 // pred_fallthru
          _
        // Predicated region
        $region21: #{tpu_custom_call.1} parent=11 // pred_check
          %p162 = pneg %p105
        $region22: #{tpu_custom_call.1} parent=11 // pred_check_branch
          %164 = sbr.rel (%p162) target = $region24
        $region23: #{tpu_custom_call.1} parent=11 // pred_region
          _
        $region24: #{tpu_custom_call.1} parent=11 // pred_fallthru
          _
      $region12: #{tpu_custom_call.1} parent=5 // pred_fallthru
        _
      %p165 = scmp.lt.s32.totalorder %s16, 2
      // Predicated region
      $region25: #{tpu_custom_call.1} parent=5 // pred_check
        %p166 = pneg %p165
      $region26: #{tpu_custom_call.1} parent=5 // pred_check_branch
        %168 = sbr.rel (%p166) target = $region28
      $region27: #{tpu_custom_call.1} parent=5 // pred_region
        // Predicated region
        $region29: #{tpu_custom_call.1} parent=27 // pred_check
          %p169 = pneg %p36
        $region30: #{tpu_custom_call.1} parent=27 // pred_check_branch
          %171 = sbr.rel (%p169) target = $region32
        $region31: #{tpu_custom_call.1} parent=27 // pred_region
          %s172 = sand.u32 %s26, 1
          %s173 = scalar_lea.sflag [#allocation4], %s172
          %s174 = sand.u32 %s26, 1
          %s175 = smul.addr %s174, 8
          %s176 = scalar_lea.vmem [#allocation3], %s175
          %s178 = ssub.s32 128, 128
          %179 = vsyncadd %s173, %s178
          %s180 = smul.addr %s16, 128
          %s181 = scalar_lea.hbm %s0, %s180
          %s183 = sshll.u32 %s176, 4
          %s184 = int_to_ptr.vmem [resolvable:$true] %s183
          %186 = dma.hbm_to_vmem [thread:$0]  %s181, 128, %s184, %s173
        $region32: #{tpu_custom_call.1} parent=27 // pred_fallthru
          _
      $region28: #{tpu_custom_call.1} parent=5 // pred_fallthru
        _
      %p187 = scmp.le.s32.totalorder 1, %s16
      %p188 = scmp.lt.s32.totalorder %s16, 3
      %p189 = pnand %p187, %p188
      %p190 = pneg %p189
      // Predicated region
      $region33: #{tpu_custom_call.1} parent=5 // pred_check
        _
      $region34: #{tpu_custom_call.1} parent=5 // pred_check_branch
        %192 = sbr.rel (%p189) target = $region36
      $region35: #{tpu_custom_call.1} parent=5 // pred_region
        %s193 = ssub.s32 %s16, 1
        %s194 = sand.u32 %s29, 1
        %s195 = scalar_lea.sflag [#allocation4], %s194
        %s196 = sand.u32 %s29, 1
        %s197 = smul.addr %s196, 8
        %s198 = scalar_lea.vmem [#allocation3], %s197
        // Predicated region
        $region37: #{tpu_custom_call.1} parent=35 // pred_check
          %p199 = pneg %p42
        $region38: #{tpu_custom_call.1} parent=35 // pred_check_branch
          %201 = sbr.rel (%p199) target = $region40
        $region39: #{tpu_custom_call.1} parent=35 // pred_region
          %202 = dma.done %s195, 128
        $region40: #{tpu_custom_call.1} parent=35 // pred_fallthru
          _
        // Predicated region
        $region41: #{tpu_custom_call.1} parent=35 // pred_check
          %p203 = pneg %p63
        $region42: #{tpu_custom_call.1} parent=35 // pred_check_branch
          %205 = sbr.rel (%p203) target = $region44
        $region43: #{tpu_custom_call.1} parent=35 // pred_region
          %206 = dma.done [#allocation6], 256
        $region44: #{tpu_custom_call.1} parent=35 // pred_fallthru
          _
        %s207 = sand.u32 %s29, 1
        %s208 = scalar_lea.sflag [#allocation4], %s207
        %s209 = sand.u32 %s29, 1
        %s210 = smul.addr %s209, 8
        %s211 = scalar_lea.vmem [#allocation3], %s210
        %p212 = pneg %p42
        %p213 = pneg %p39
        %p214 = pneg %p63
        %p215 = pneg %p60
        %p216 = pneg %p84
        %p217 = pneg %p81
        %p218 = pneg %p105
        %p219 = pneg %p102
        %p220 = pneg %p131
        %p221 = pneg %p128
        %p222 = scmp.lt.s32.totalorder %s21, 1
        %s223 = scalar_select %p222, %s21, 1
        %s224 = smul.addr %s223, 8
        %s225 = scalar_lea.vmem %s4, %s224
        %p226 = scmp.lt.s32.totalorder %s21, 1
        %s227 = scalar_select %p226, %s21, 1
        %s228 = smul.addr %s227, 8
        %s229 = scalar_lea.vmem %s4, %s228
        %v231 = vld [vmem:[%s198] sm:$0xff]
        %v232 = vpack.c.bf16 %v231, %v231
        %v233 = vld [vmem:[%s2] sm:$0x1]
        %v234 = vld [vmem:[%s2 + $0x1] sm:$0x1]
        %v235 = vld [vmem:[#allocation5] sm:$0xf]
        %v236 = vld [vmem:[#allocation5 + $0x4] sm:$0xf]
        %v237 = vld [vmem:[#allocation5 + $0x8] sm:$0xf]
        %v238 = vld [vmem:[#allocation5 + $0xc] sm:$0xf]
        %v239 = vlaneseq
        %v240 = vshrl.u32 %v239, 7
        %v241 = vsub.s32 0, %v240
        %v242 = vrot.slane %v233, %v241
        %v247 = vunpack.c.l.b16 %v235
        %v248 = vunpack.c.l.b16 %v236
        %v249 = vunpack.c.l.b16 %v237
        %v250 = vunpack.c.l.b16 %v238
        %v251 = vpack.c.b16 %v248, %v247
        %v252 = vpack.c.b16 %v250, %v249
        %vm255 = vcmask 261120
        %v257 = vsel %vm255, %v232, 0
        %259 = vmatprep.subr.bf16.mxu0 0
        %260 = vmatpush1.bf16.msra.mxu0 %v251
        %261 = vmatprep.subr.bf16.mxu0 0
        %262 = vmatpush1.bf16.msra.mxu0 %v252
        %263 = vmatprep.subr.bf16.mxu0 0
        %264 = vmatpush1.bf16.msra.mxu0 0
        %265 = vmatprep.subr.bf16.mxu0 0
        %266 = vmatpush1.bf16.msra.mxu0 0
        %267 = vmatprep.subr.bf16.mxu0 0
        %268 = vmatpush1.bf16.msra.mxu0 0
        %269 = vmatprep.subr.bf16.mxu0 0
        %270 = vmatpush1.bf16.msra.mxu0 0
        %271 = vmatprep.subr.bf16.mxu0 0
        %272 = vmatpush1.bf16.msra.mxu0 0
        %273 = vmatprep.subr.bf16.mxu0 0
        %274 = vmatpush1.bf16.msra.mxu0 0
        %275 = vmatprep.subr.bf16.mxu0 0
        %276 = vmatpush1.bf16.msra.mxu0 0
        %277 = vmatprep.subr.bf16.mxu0 0
        %278 = vmatpush1.bf16.msra.mxu0 0
        %279 = vmatprep.subr.bf16.mxu0 0
        %280 = vmatpush1.bf16.msra.mxu0 0
        %281 = vmatprep.subr.bf16.mxu0 0
        %282 = vmatpush1.bf16.msra.mxu0 0
        %283 = vmatprep.subr.bf16.mxu0 0
        %284 = vmatpush1.bf16.msra.mxu0 0
        %285 = vmatprep.subr.bf16.mxu0 0
        %286 = vmatpush1.bf16.msra.mxu0 0
        %287 = vmatprep.subr.bf16.mxu0 0
        %288 = vmatpush1.bf16.msra.mxu0 0
        %289 = vmatprep.subr.bf16.mxu0 0
        %290 = vmatpush1.bf16.msra.mxu0 0
        %291 = vmatprep.mubr.bf16.mxu0 0
        %292 = vmatmul.mubr.bf16.gmra.mrb[0].mxu0 %v257
        %v293 = vpop.f32.mrb[0].mxu0
        %v294 = vadd.f32 %v242, %v293
        %v295 = vpop.f32.mrb[0].mxu0
        %v296 = vpop.f32.mrb[0].mxu0
        %v297 = vpop.f32.mrb[0].mxu0
        %298 = vdwg.mxu0
        %v299 = vmax.f32 %v294, 0.0
        %v300 = vsel %vm255, %v299, 0.0
        %301 = vadd.xlane.f32.xlu0 %v300
        %v302 = vpop.xlane.xlu0 %301
        %v303 = vrcp.pop 32.0
        %v304 = vmul.f32 %v302, %v303
        %v305 = vsub.f32 %v299, %v304
        %v306 = vmul.f32 %v305, %v305
        %v307 = vsel %vm255, %v306, 0.0
        %308 = vadd.xlane.f32.xlu0 %v307
        %v309 = vpop.xlane.xlu0 %308
        %v310 = vmul.f32 %v309, %v303
        %v311 = vlaneseq
        %v312 = vshrl.u32 %v311, 7
        %v313 = vsub.s32 0, %v312
        %v314 = vrot.slane %v234, %v313
        %v315 = vmul.f32 %v305, %v314
        %v316 = vsel %vm255, %v315, 0.0
        %317 = vadd.xlane.f32.xlu0 %v316
        %v318 = vpop.xlane.xlu0 %317
        %v319 = vadd.f32 %v310, 1e-12
        %v320 = vrsqrt.pop %v319
        %v321 = vmul.f32 %v318, %v320
        %v322 = vld [vmem:[#allocation2] sm:$0x1]
        %v324 = vlaneseq
        %v325 = vshrl.u32 %v324, 7
        %v326 = vsub.s32 0, %v325
        %v327 = vrot.slane %v322, %v326
        %v329 = vadd.f32 %v321, %v327
        %vm330 = vcmask 7168
        %331 = vst.msk [vmem:[%s229] sm:$0xff] %vm330, %v329
        %p332 = scmp.lt.s32.totalorder %s21, 1
        %s333 = scalar_select %p332, %s21, 1
        %s334 = smul.addr %s333, 8
        %s335 = scalar_lea.vmem %s4, %s334
        // Predicated region
        $region45: #{tpu_custom_call.1} parent=35 // pred_check
          %p336 = pneg %p128
        $region46: #{tpu_custom_call.1} parent=35 // pred_check_branch
          %338 = sbr.rel (%p336) target = $region48
        $region47: #{tpu_custom_call.1} parent=35 // pred_region
          _
        $region48: #{tpu_custom_call.1} parent=35 // pred_fallthru
          _
      $region36: #{tpu_custom_call.1} parent=5 // pred_fallthru
        _
      %p339 = scmp.le.s32.totalorder 2, %s16
      // Predicated region
      $region49: #{tpu_custom_call.1} parent=5 // pred_check
        %p340 = pneg %p339
      $region50: #{tpu_custom_call.1} parent=5 // pred_check_branch
        %342 = sbr.rel (%p340) target = $region52
      $region51: #{tpu_custom_call.1} parent=5 // pred_region
        %s343 = ssub.s32 %s16, 2
        // Predicated region
        $region53: #{tpu_custom_call.1} parent=51 // pred_check
          %p344 = pneg %p134
        $region54: #{tpu_custom_call.1} parent=51 // pred_check_branch
          %346 = sbr.rel (%p344) target = $region56
        $region55: #{tpu_custom_call.1} parent=51 // pred_region
          %p347 = scmp.lt.s32.totalorder %s22, 1
          %s348 = scalar_select %p347, %s22, 1
          %s349 = smul.addr %s348, 8
          %s350 = scalar_lea.vmem %s4, %s349
        $region56: #{tpu_custom_call.1} parent=51 // pred_fallthru
          _
      $region52: #{tpu_custom_call.1} parent=5 // pred_fallthru
        _
    $region6: #{tpu_custom_call.1} parent=1 // loop_footer
      %s20 = sadd.s32 1, %s16
    $region7: #{tpu_custom_call.1} parent=1 // loop_footer_branch
      %15 = sbr.rel target = $region3
    $region8: #{tpu_custom_call.1} parent=1 // loop_exit
      _
    %351 = vsyncpa [#allocation4], 1
    %s352 = scalar_lea.sflag [#allocation4], 1
    %353 = vsyncpa %s352, 1
    %354 = vsyncpa [#allocation6], 1

</llo_original>
